<compile_context>
chip_gen: v7x
topology: tpu7x:2x2x1
jax: 0.10.0
libtpu: 0.0.40
codegen_flags: <defaults>
</compile_context>

<pallas_src>
import functools

import jax
import jax.numpy as jnp
from jax.experimental import pallas as pl
from jax.experimental.pallas import tpu as pltpu

_LANE = 128
_NEG_INF = -1e30  # bias for padded class columns -> exp() underflows to 0


def _round_up(x, m):
    return (x + m - 1) // m * m


# ----------------------------------------------------------------------------
# Fused kernel
# ----------------------------------------------------------------------------
def _crd_distiller_kernel(x_ref, wf_ref, bf_ref, wc_ref, bc_ref, y_ref,
                          logit_ref, crd_ref, ce_ref, *,
                          temperature, feat_pad):
    # --- fused teacher+student feature matmul: ONE MXU pass over x_flat -----
    # wf = concat([t_w_feat, s_w_feat], axis=1), each lane-padded to feat_pad.
    feats = jnp.dot(x_ref[...], wf_ref[...],
                    preferred_element_type=jnp.float32) + bf_ref[...]
    t_feat = feats[:, :feat_pad]       # teacher branch (torch.no_grad in spec)
    s_feat = feats[:, feat_pad:]       # student branch

    # --- student classifier logits (stay in VMEM; lane-dense k_pad) ---------
    s_logit = jnp.dot(s_feat.astype(wc_ref.dtype), wc_ref[...],
                      preferred_element_type=jnp.float32) + bc_ref[...]
    logit_ref[...] = s_logit

    # --- CRD (InfoNCE): normalize, sim = (s_n/T) @ t_n^T, CE vs diagonal ----
    inv_t = jnp.float32(1.0 / temperature)
    s_n = s_feat * (jax.lax.rsqrt(
        jnp.sum(s_feat * s_feat, axis=-1, keepdims=True) + 1e-12) * inv_t)
    t_n = t_feat * jax.lax.rsqrt(
        jnp.sum(t_feat * t_feat, axis=-1, keepdims=True) + 1e-12)
    # contract last dims directly -> no transpose / extra VMEM copy of t_n
    sim = jax.lax.dot_general(s_n, t_n, (((1,), (1,)), ((), ())),
                              preferred_element_type=jnp.float32)      # (N, N)
    pos = jnp.sum(s_n * t_n, axis=-1, keepdims=True)                   # diag(sim)
    m = jnp.max(sim, axis=-1, keepdims=True)
    lse = m + jnp.log(jnp.sum(jnp.exp(sim - m), axis=-1, keepdims=True))
    crd_ref[...] = lse - pos                                           # (N, 1)

    # --- classification CE with integer labels (no one-hot input) -----------
    col = jax.lax.broadcasted_iota(jnp.int32, s_logit.shape, 1)
    pos_logit = jnp.sum(jnp.where(col == y_ref[...], s_logit, 0.0),
                        axis=-1, keepdims=True)
    mz = jnp.max(s_logit, axis=-1, keepdims=True)
    lse_z = mz + jnp.log(jnp.sum(jnp.exp(s_logit - mz), axis=-1, keepdims=True))
    ce_ref[...] = lse_z - pos_logit                                    # (N, 1)


# ----------------------------------------------------------------------------
# pallas_call wrapper
# ----------------------------------------------------------------------------
def _full_spec(shape):
    return pl.BlockSpec(shape, lambda i: (0,) * len(shape))


def crd_distiller_forward(params, x, y, *, num_classes, alpha=0.5,
                          temperature=0.07, compute_dtype=jnp.float32):
    n = x.shape[0]
    x_flat = x.reshape(n, -1).astype(compute_dtype)   # NCHW -> (N, C*H*W)
    in_dim = x_flat.shape[1]
    feat_dim = params["s_w_feat"].shape[1]

    feat_pad = _round_up(feat_dim, _LANE)
    k_pad = _round_up(num_classes, _LANE)

    # Lane-pad weights to 128-multiples and merge teacher/student feature
    # weights so x_flat is read by a single MXU matmul (glue, outside kernel).
    def pad2(w, rows, cols, fill=0.0):
        return jnp.pad(w, ((0, rows - w.shape[0]), (0, cols - w.shape[1])),
                       constant_values=fill)

    wf_cat = jnp.concatenate(
        [pad2(params["t_w_feat"], in_dim, feat_pad),
         pad2(params["s_w_feat"], in_dim, feat_pad)], axis=1
    ).astype(compute_dtype)                                   # (in_dim, 2*feat_pad)
    bf_cat = jnp.concatenate(
        [jnp.pad(params["t_b_feat"], (0, feat_pad - feat_dim)),
         jnp.pad(params["s_b_feat"], (0, feat_pad - feat_dim))]
    ).reshape(1, 2 * feat_pad).astype(jnp.float32)

    wc = pad2(params["s_w_cls"], feat_pad, k_pad).astype(compute_dtype)
    bc = jnp.pad(params["s_b_cls"], (0, k_pad - num_classes),
                 constant_values=_NEG_INF).reshape(1, k_pad).astype(jnp.float32)

    y_in = y.astype(jnp.int32).reshape(n, 1)

    itemsize = jnp.dtype(compute_dtype).itemsize
    cost = pl.CostEstimate(
        flops=(2 * n * in_dim * 2 * feat_pad          # fused feature matmul
               + 2 * n * feat_pad * k_pad             # classifier matmul
               + 2 * n * n * feat_pad),               # CRD similarity matmul
        transcendentals=n * n + n * k_pad + 6 * n,
        bytes_accessed=((n * in_dim + in_dim * 2 * feat_pad + feat_pad * k_pad)
                        * itemsize
                        + (2 * feat_pad + k_pad) * 4      # biases (f32)
                        + n * 4                           # labels (i32)
                        + (n * k_pad + 2 * n) * 4),       # outputs (f32)
    )

    kernel = functools.partial(_crd_distiller_kernel,
                               temperature=float(temperature),
                               feat_pad=feat_pad)

    s_logit_pad, crd_rows, ce_rows = pl.pallas_call(
        kernel,
        out_shape=(
            jax.ShapeDtypeStruct((n, k_pad), jnp.float32),
            jax.ShapeDtypeStruct((n, 1), jnp.float32),
            jax.ShapeDtypeStruct((n, 1), jnp.float32),
        ),
        grid=(1,),
        in_specs=[
            _full_spec((n, in_dim)),
            _full_spec((in_dim, 2 * feat_pad)),
            _full_spec((1, 2 * feat_pad)),
            _full_spec((feat_pad, k_pad)),
            _full_spec((1, k_pad)),
            _full_spec((n, 1)),
        ],
        out_specs=(
            _full_spec((n, k_pad)),
            _full_spec((n, 1)),
            _full_spec((n, 1)),
        ),
        compiler_params=pltpu.CompilerParams(
            dimension_semantics=("arbitrary",)),
        cost_estimate=cost,
    )(x_flat, wf_cat, bf_cat, wc, bc, y_in)

    # Tiny wrapper-side reductions (review-sanctioned alternative to SMEM
    # scalar outputs) + slice off padded class columns.
    crd_loss_val = jnp.mean(crd_rows)
    ce_val = jnp.mean(ce_rows)
    total_loss = alpha * crd_loss_val + (1.0 - alpha) * ce_val
    s_logit = s_logit_pad[:, :num_classes]
    return total_loss, s_logit


# ----------------------------------------------------------------------------
# Params + pure-JAX reference
# ----------------------------------------------------------------------------
def make_params(key, in_dim, feat_dim, num_classes):
    ks = jax.random.split(key, 4)
    scale1 = 1.0 / jnp.sqrt(in_dim)
    scale2 = 1.0 / jnp.sqrt(feat_dim)
    return {
        # teacher
        "t_w_feat": jax.random.normal(ks[0], (in_dim, feat_dim), jnp.float32) * scale1,
        "t_b_feat": jnp.zeros((feat_dim,), jnp.float32),
        "t_w_cls": jax.random.normal(ks[1], (feat_dim, num_classes), jnp.float32) * scale2,
        "t_b_cls": jnp.zeros((num_classes,), jnp.float32),
        # student
        "s_w_feat": jax.random.normal(ks[2], (in_dim, feat_dim), jnp.float32) * scale1,
        "s_b_feat": jnp.zeros((feat_dim,), jnp.float32),
        "s_w_cls": jax.random.normal(ks[3], (feat_dim, num_classes), jnp.float32) * scale2,
        "s_b_cls": jnp.zeros((num_classes,), jnp.float32),
    }


def _reference(params, x, y, *, alpha=0.5, temperature=0.07):
    n = x.shape[0]
    xf = x.reshape(n, -1)
    t_feat = xf @ params["t_w_feat"] + params["t_b_feat"]
    s_feat = xf @ params["s_w_feat"] + params["s_b_feat"]
    s_logit = s_feat @ params["s_w_cls"] + params["s_b_cls"]
    s_n = s_feat / jnp.sqrt(jnp.sum(s_feat**2, -1, keepdims=True) + 1e-12)
    t_n = t_feat / jnp.sqrt(jnp.sum(t_feat**2, -1, keepdims=True) + 1e-12)
    logits = (s_n @ t_n.T) / temperature
    idx = jnp.arange(n)
    crd = jnp.mean(jax.nn.logsumexp(logits, -1) - logits[idx, idx])
    ce = jnp.mean(jax.nn.logsumexp(s_logit, -1) - s_logit[idx, y])
    return alpha * crd + (1.0 - alpha) * ce, s_logit


# ----------------------------------------------------------------------------
# Demo / correctness check
# ----------------------------------------------------------------------------
if __name__ == "__main__":
    # small shapes consistent with the module: batch=8, channels=4, 16x16 images
    N, C, H, W = 8, 4, 16, 16
    FEAT_DIM, NUM_CLASSES = 32, 10
    key = jax.random.PRNGKey(0)
    kx, ky, kp = jax.random.split(key, 3)

    x = jax.random.normal(kx, (N, C, H, W), jnp.float32)
    y = jax.random.randint(ky, (N,), 0, NUM_CLASSES)
    params = make_params(kp, C * H * W, FEAT_DIM, NUM_CLASSES)

    ref_loss, ref_logit = _reference(params, x, y, alpha=0.5, temperature=0.07)

    # f32 path: matches PyTorch-equivalent reference semantics.
    fwd_f32 = jax.jit(functools.partial(
        crd_distiller_forward, num_classes=NUM_CLASSES, alpha=0.5,
        temperature=0.07, compute_dtype=jnp.float32))
    loss_f32, logit_f32 = fwd_f32(params, x, y)
    jax.block_until_ready((loss_f32, logit_f32))
    assert logit_f32.shape == (N, NUM_CLASSES)
    assert jnp.allclose(loss_f32, ref_loss, rtol=1e-3, atol=1e-3), (loss_f32, ref_loss)
    assert jnp.allclose(logit_f32, ref_logit, rtol=1e-3, atol=1e-3)

    # bf16 MXU path (f32 accumulation, f32 norm/LSE math) — production config;
    # looser tolerance accounts for bf16 input rounding.
    fwd_bf16 = jax.jit(functools.partial(
        crd_distiller_forward, num_classes=NUM_CLASSES, alpha=0.5,
        temperature=0.07, compute_dtype=jnp.bfloat16))
    loss_bf16, logit_bf16 = fwd_bf16(params, x, y)
    jax.block_until_ready((loss_bf16, logit_bf16))
    assert bool(jnp.isfinite(loss_bf16))
    assert jnp.allclose(loss_bf16, ref_loss, rtol=0.1, atol=0.5), (loss_bf16, ref_loss)
    assert jnp.allclose(logit_bf16, ref_logit, rtol=0.1, atol=0.2)

    print("KERNEL_OK")
</pallas_src>

<mosaic_0001>
module attributes {stable_mosaic.version = 11 : i64} {
  func.func @_crd_distiller_kernel(%arg0: i32, %arg1: memref<8x1024xf32, #tpu.memory_space<vmem>>, %arg2: memref<1024x256xf32, #tpu.memory_space<vmem>>, %arg3: memref<1x256xf32, #tpu.memory_space<vmem>>, %arg4: memref<128x128xf32, #tpu.memory_space<vmem>>, %arg5: memref<1x128xf32, #tpu.memory_space<vmem>>, %arg6: memref<8x1xi32, #tpu.memory_space<vmem>>, %arg7: memref<8x128xf32, #tpu.memory_space<vmem>>, %arg8: memref<8x1xf32, #tpu.memory_space<vmem>>, %arg9: memref<8x1xf32, #tpu.memory_space<vmem>>) attributes {dimension_semantics = [#tpu.dimension_semantics<arbitrary>], iteration_bounds = array<i64: 1>, scalar_prefetch = 0 : i64, scratch_operands = 0 : i64, tpu.core_type = #tpu.core_type<tc>, window_params = [{pipeline_mode = #tpu.pipeline_mode<synchronous>, transform_indices = @transform_0, window_bounds = array<i64: 8, 1024>}, {pipeline_mode = #tpu.pipeline_mode<synchronous>, transform_indices = @transform_1, window_bounds = array<i64: 1024, 256>}, {pipeline_mode = #tpu.pipeline_mode<synchronous>, transform_indices = @transform_2, window_bounds = array<i64: 1, 256>}, {pipeline_mode = #tpu.pipeline_mode<synchronous>, transform_indices = @transform_3, window_bounds = array<i64: 128, 128>}, {pipeline_mode = #tpu.pipeline_mode<synchronous>, transform_indices = @transform_4, window_bounds = array<i64: 1, 128>}, {pipeline_mode = #tpu.pipeline_mode<synchronous>, transform_indices = @transform_5, window_bounds = array<i64: 8, 1>}, {pipeline_mode = #tpu.pipeline_mode<synchronous>, transform_indices = @transform_6, window_bounds = array<i64: 8, 128>}, {pipeline_mode = #tpu.pipeline_mode<synchronous>, transform_indices = @transform_7, window_bounds = array<i64: 8, 1>}, {pipeline_mode = #tpu.pipeline_mode<synchronous>, transform_indices = @transform_8, window_bounds = array<i64: 8, 1>}]} {
    %c0 = arith.constant 0 : index
    %c0_0 = arith.constant 0 : index
    %0 = vector.load %arg1[%c0, %c0_0] : memref<8x1024xf32, #tpu.memory_space<vmem>>, vector<8x1024xf32>
    %c0_1 = arith.constant 0 : index
    %c0_2 = arith.constant 0 : index
    %1 = vector.load %arg2[%c0_1, %c0_2] : memref<1024x256xf32, #tpu.memory_space<vmem>>, vector<1024x256xf32>
    %cst = arith.constant dense<0.000000e+00> : vector<8x256xf32>
    %2 = tpu.matmul %0, %1, %cst {dimension_numbers = #tpu.dot_dimension_numbers<[1], [0], [0], [1], [0, 0, 1, 1], [], []>} : vector<8x1024xf32>, vector<1024x256xf32>, vector<8x256xf32> -> vector<8x256xf32>
    %c0_3 = arith.constant 0 : index
    %c0_4 = arith.constant 0 : index
    %3 = vector.load %arg3[%c0_3, %c0_4] : memref<1x256xf32, #tpu.memory_space<vmem>>, vector<1x256xf32>
    %4 = vector.broadcast %3 : vector<1x256xf32> to vector<8x256xf32>
    %5 = arith.addf %2, %4 : vector<8x256xf32>
    %6 = vector.extract_strided_slice %5 {offsets = [0, 0], sizes = [8, 128], strides = [1, 1]} : vector<8x256xf32> to vector<8x128xf32>
    %7 = vector.extract_strided_slice %5 {offsets = [0, 128], sizes = [8, 128], strides = [1, 1]} : vector<8x256xf32> to vector<8x128xf32>
    %c0_5 = arith.constant 0 : index
    %c0_6 = arith.constant 0 : index
    %8 = vector.load %arg4[%c0_5, %c0_6] : memref<128x128xf32, #tpu.memory_space<vmem>>, vector<128x128xf32>
    %cst_7 = arith.constant dense<0.000000e+00> : vector<8x128xf32>
    %9 = tpu.matmul %7, %8, %cst_7 {dimension_numbers = #tpu.dot_dimension_numbers<[1], [0], [0], [1], [0, 0, 1, 1], [], []>} : vector<8x128xf32>, vector<128x128xf32>, vector<8x128xf32> -> vector<8x128xf32>
    %c0_8 = arith.constant 0 : index
    %c0_9 = arith.constant 0 : index
    %10 = vector.load %arg5[%c0_8, %c0_9] : memref<1x128xf32, #tpu.memory_space<vmem>>, vector<1x128xf32>
    %11 = vector.broadcast %10 : vector<1x128xf32> to vector<8x128xf32>
    %12 = arith.addf %9, %11 : vector<8x128xf32>
    %c0_10 = arith.constant 0 : index
    %c0_11 = arith.constant 0 : index
    %13 = vector.load %arg7[%c0_10, %c0_11] : memref<8x128xf32, #tpu.memory_space<vmem>>, vector<8x128xf32>
    tpu.vector_store %arg7[%c0_10, %c0_11], %12 {strides = array<i32>} : memref<8x128xf32, #tpu.memory_space<vmem>>, vector<8x128xf32>,
    %14 = arith.mulf %7, %7 : vector<8x128xf32>
    %cst_12 = arith.constant dense<0.000000e+00> : vector<8xf32>
    %15 = vector.multi_reduction <add>, %14, %cst_12 [1] : vector<8x128xf32> to vector<8xf32>
    %16 = vector.shape_cast %15 : vector<8xf32> to vector<8x1xf32>
    %cst_13 = arith.constant 9.99999996E-13 : f32
    %17 = vector.broadcast %cst_13 : f32 to vector<8x1xf32>
    %18 = arith.addf %16, %17 : vector<8x1xf32>
    %19 = math.rsqrt %18 : vector<8x1xf32>
    %cst_14 = arith.constant 14.2857141 : f32
    %20 = vector.broadcast %cst_14 : f32 to vector<8x1xf32>
    %21 = arith.mulf %19, %20 : vector<8x1xf32>
    %22 = vector.broadcast %21 : vector<8x1xf32> to vector<8x128xf32>
    %23 = arith.mulf %7, %22 : vector<8x128xf32>
    %24 = arith.mulf %6, %6 : vector<8x128xf32>
    %cst_15 = arith.constant dense<0.000000e+00> : vector<8xf32>
    %25 = vector.multi_reduction <add>, %24, %cst_15 [1] : vector<8x128xf32> to vector<8xf32>
    %26 = vector.shape_cast %25 : vector<8xf32> to vector<8x1xf32>
    %cst_16 = arith.constant 9.99999996E-13 : f32
    %27 = vector.broadcast %cst_16 : f32 to vector<8x1xf32>
    %28 = arith.addf %26, %27 : vector<8x1xf32>
    %29 = math.rsqrt %28 : vector<8x1xf32>
    %30 = vector.broadcast %29 : vector<8x1xf32> to vector<8x128xf32>
    %31 = arith.mulf %6, %30 : vector<8x128xf32>
    %cst_17 = arith.constant dense<0.000000e+00> : vector<8x8xf32>
    %32 = tpu.matmul %23, %31, %cst_17 {dimension_numbers = #tpu.dot_dimension_numbers<[1], [1], [0], [0], [0, 0, 1, 0], [], []>} : vector<8x128xf32>, vector<8x128xf32>, vector<8x8xf32> -> vector<8x8xf32>
    %33 = arith.mulf %23, %31 : vector<8x128xf32>
    %cst_18 = arith.constant dense<0.000000e+00> : vector<8xf32>
    %34 = vector.multi_reduction <add>, %33, %cst_18 [1] : vector<8x128xf32> to vector<8xf32>
    %35 = vector.shape_cast %34 : vector<8xf32> to vector<8x1xf32>
    %cst_19 = arith.constant dense<0xFF800000> : vector<8xf32>
    %36 = vector.multi_reduction <maximumf>, %32, %cst_19 [1] : vector<8x8xf32> to vector<8xf32>
    %37 = vector.shape_cast %36 : vector<8xf32> to vector<8x1xf32>
    %38 = vector.broadcast %37 : vector<8x1xf32> to vector<8x8xf32>
    %39 = arith.subf %32, %38 : vector<8x8xf32>
    %40 = math.exp %39 : vector<8x8xf32>
    %cst_20 = arith.constant dense<0.000000e+00> : vector<8xf32>
    %41 = vector.multi_reduction <add>, %40, %cst_20 [1] : vector<8x8xf32> to vector<8xf32>
    %42 = vector.shape_cast %41 : vector<8xf32> to vector<8x1xf32>
    %43 = math.log %42 : vector<8x1xf32>
    %44 = arith.addf %37, %43 : vector<8x1xf32>
    %45 = arith.subf %44, %35 : vector<8x1xf32>
    %c0_21 = arith.constant 0 : index
    %c0_22 = arith.constant 0 : index
    %46 = vector.load %arg8[%c0_21, %c0_22] : memref<8x1xf32, #tpu.memory_space<vmem>>, vector<8x1xf32>
    tpu.vector_store %arg8[%c0_21, %c0_22], %45 {strides = array<i32>} : memref<8x1xf32, #tpu.memory_space<vmem>>, vector<8x1xf32>,
    %47 = tpu.iota {dimensions = array<i32: 1>} : vector<8x128xi32>
    %c0_23 = arith.constant 0 : index
    %c0_24 = arith.constant 0 : index
    %48 = vector.load %arg6[%c0_23, %c0_24] : memref<8x1xi32, #tpu.memory_space<vmem>>, vector<8x1xi32>
    %49 = vector.broadcast %48 : vector<8x1xi32> to vector<8x128xi32>
    %50 = arith.cmpi eq, %47, %49 : vector<8x128xi32>
    %cst_25 = arith.constant 0.000000e+00 : f32
    %51 = vector.broadcast %cst_25 : f32 to vector<8x128xf32>
    %52 = arith.select %50, %12, %51 : vector<8x128xi1>, vector<8x128xf32>
    %cst_26 = arith.constant dense<0.000000e+00> : vector<8xf32>
    %53 = vector.multi_reduction <add>, %52, %cst_26 [1] : vector<8x128xf32> to vector<8xf32>
    %54 = vector.shape_cast %53 : vector<8xf32> to vector<8x1xf32>
    %cst_27 = arith.constant dense<0xFF800000> : vector<8xf32>
    %55 = vector.multi_reduction <maximumf>, %12, %cst_27 [1] : vector<8x128xf32> to vector<8xf32>
    %56 = vector.shape_cast %55 : vector<8xf32> to vector<8x1xf32>
    %57 = vector.broadcast %56 : vector<8x1xf32> to vector<8x128xf32>
    %58 = arith.subf %12, %57 : vector<8x128xf32>
    %59 = math.exp %58 : vector<8x128xf32>
    %cst_28 = arith.constant dense<0.000000e+00> : vector<8xf32>
    %60 = vector.multi_reduction <add>, %59, %cst_28 [1] : vector<8x128xf32> to vector<8xf32>
    %61 = vector.shape_cast %60 : vector<8xf32> to vector<8x1xf32>
    %62 = math.log %61 : vector<8x1xf32>
    %63 = arith.addf %56, %62 : vector<8x1xf32>
    %64 = arith.subf %63, %54 : vector<8x1xf32>
    %c0_29 = arith.constant 0 : index
    %c0_30 = arith.constant 0 : index
    %65 = vector.load %arg9[%c0_29, %c0_30] : memref<8x1xf32, #tpu.memory_space<vmem>>, vector<8x1xf32>
    tpu.vector_store %arg9[%c0_29, %c0_30], %64 {strides = array<i32>} : memref<8x1xf32, #tpu.memory_space<vmem>>, vector<8x1xf32>,
    return
  }
  func.func @transform_0(%arg0: i32) -> (i32, i32) {
    %c0_i32 = arith.constant 0 : i32
    %c0_i32_0 = arith.constant 0 : i32
    %c0_i32_1 = arith.constant 0 : i32
    return %c0_i32, %c0_i32_0 : i32, i32
  }
  func.func @transform_1(%arg0: i32) -> (i32, i32) {
    %c0_i32 = arith.constant 0 : i32
    %c0_i32_0 = arith.constant 0 : i32
    %c0_i32_1 = arith.constant 0 : i32
    return %c0_i32, %c0_i32_0 : i32, i32
  }
  func.func @transform_2(%arg0: i32) -> (i32, i32) {
    %c0_i32 = arith.constant 0 : i32
    %c0_i32_0 = arith.constant 0 : i32
    %c0_i32_1 = arith.constant 0 : i32
    return %c0_i32, %c0_i32_0 : i32, i32
  }
  func.func @transform_3(%arg0: i32) -> (i32, i32) {
    %c0_i32 = arith.constant 0 : i32
    %c0_i32_0 = arith.constant 0 : i32
    %c0_i32_1 = arith.constant 0 : i32
    return %c0_i32, %c0_i32_0 : i32, i32
  }
  func.func @transform_4(%arg0: i32) -> (i32, i32) {
    %c0_i32 = arith.constant 0 : i32
    %c0_i32_0 = arith.constant 0 : i32
    %c0_i32_1 = arith.constant 0 : i32
    return %c0_i32, %c0_i32_0 : i32, i32
  }
  func.func @transform_5(%arg0: i32) -> (i32, i32) {
    %c0_i32 = arith.constant 0 : i32
    %c0_i32_0 = arith.constant 0 : i32
    %c0_i32_1 = arith.constant 0 : i32
    return %c0_i32, %c0_i32_0 : i32, i32
  }
  func.func @transform_6(%arg0: i32) -> (i32, i32) {
    %c0_i32 = arith.constant 0 : i32
    %c0_i32_0 = arith.constant 0 : i32
    %c0_i32_1 = arith.constant 0 : i32
    return %c0_i32, %c0_i32_0 : i32, i32
  }
  func.func @transform_7(%arg0: i32) -> (i32, i32) {
    %c0_i32 = arith.constant 0 : i32
    %c0_i32_0 = arith.constant 0 : i32
    %c0_i32_1 = arith.constant 0 : i32
    return %c0_i32, %c0_i32_0 : i32, i32
  }
  func.func @transform_8(%arg0: i32) -> (i32, i32) {
    %c0_i32 = arith.constant 0 : i32
    %c0_i32_0 = arith.constant 0 : i32
    %c0_i32_1 = arith.constant 0 : i32
    return %c0_i32, %c0_i32_0 : i32, i32
  }
}

</mosaic_0001>

<llo_original>
// kernel: crd_distiller_forward.1
$region0: #{crd_distiller_forward.1}
  #allocation0 [shape = 'u32[]', space=smem, size = 0x4, offset = 0x4, fixed_abs, tag = 'smem constant byte address 0x4 - core index']
  #allocation1 [shape = 'u32[144,128]{1,0:T(1,128)}', space=vmem, size = 0x12000, scoped, tag = 'internal scratch']
  %s0 = inlined_call_operand.vmem [shape: f32[8,1024], index: 0, kind: input, shape index: {}]
  %s1 = inlined_call_operand.vmem [shape: f32[1024,256], index: 1, kind: input, shape index: {}]
  %s2 = inlined_call_operand.vmem [shape: f32[1,256], index: 2, kind: input, shape index: {}]
  %s3 = inlined_call_operand.vmem [shape: f32[128,128], index: 3, kind: input, shape index: {}]
  %s4 = inlined_call_operand.vmem [shape: f32[1,128], index: 4, kind: input, shape index: {}]
  %s5 = inlined_call_operand.vmem [shape: s32[8,1], index: 5, kind: input, shape index: {}]
  %s6 = inlined_call_operand.hbm [shape: f32[8,128], index: 6, kind: output, shape index: {0}]
  %s7 = inlined_call_operand.vmem [shape: f32[8,1], index: 7, kind: output, shape index: {1}]
  %s8 = inlined_call_operand.vmem [shape: f32[8,1], index: 8, kind: output, shape index: {2}]
  %9 = xla_tuple %s6, %s7, %s8
  %s10 = sld [smem:[#allocation0]]
  $region50: #{crd_distiller_forward.1} parent=0
    _
  %s12 = ssub.s32 1, %s10
  %s13 = scalar_select 0, %s12, %s10
  $region1: #{crd_distiller_forward.1} parent=0
    #allocation2 [shape = 'u8[4096]{0}', space=vmem, size = 0x1000, scoped, tag = 'output window, operand 0, single buffered']
    #allocation3 [shape = 's32[1]{0}', space=sflag, size = 0x4, scoped, tag = 'scoped memory for crd_distiller_forward.1']
    %14 = vsyncpa [#allocation3], 0
    // Predicated region
    $region2: #{crd_distiller_forward.1} parent=1 // pred_check
      _
    $region3: #{crd_distiller_forward.1} parent=1 // pred_check_branch
      %16 = sbr.rel (0) target = $region5
    $region4: #{crd_distiller_forward.1} parent=1 // pred_region
      _
    $region5: #{crd_distiller_forward.1} parent=1 // pred_fallthru
      _
    // Predicated region
    $region6: #{crd_distiller_forward.1} parent=1 // pred_check
      _
    $region7: #{crd_distiller_forward.1} parent=1 // pred_check_branch
      %18 = sbr.rel (0) target = $region9
    $region8: #{crd_distiller_forward.1} parent=1 // pred_region
      _
    $region9: #{crd_distiller_forward.1} parent=1 // pred_fallthru
      _
    // Predicated region
    $region10: #{crd_distiller_forward.1} parent=1 // pred_check
      _
    $region11: #{crd_distiller_forward.1} parent=1 // pred_check_branch
      %20 = sbr.rel (0) target = $region13
    $region12: #{crd_distiller_forward.1} parent=1 // pred_region
      _
    $region13: #{crd_distiller_forward.1} parent=1 // pred_fallthru
      _
    // Predicated region
    $region14: #{crd_distiller_forward.1} parent=1 // pred_check
      _
    $region15: #{crd_distiller_forward.1} parent=1 // pred_check_branch
      %22 = sbr.rel (0) target = $region17
    $region16: #{crd_distiller_forward.1} parent=1 // pred_region
      _
    $region17: #{crd_distiller_forward.1} parent=1 // pred_fallthru
      _
    // Predicated region
    $region18: #{crd_distiller_forward.1} parent=1 // pred_check
      _
    $region19: #{crd_distiller_forward.1} parent=1 // pred_check_branch
      %24 = sbr.rel (0) target = $region21
    $region20: #{crd_distiller_forward.1} parent=1 // pred_region
      _
    $region21: #{crd_distiller_forward.1} parent=1 // pred_fallthru
      _
    // Predicated region
    $region22: #{crd_distiller_forward.1} parent=1 // pred_check
      _
    $region23: #{crd_distiller_forward.1} parent=1 // pred_check_branch
      %26 = sbr.rel (0) target = $region25
    $region24: #{crd_distiller_forward.1} parent=1 // pred_region
      _
    $region25: #{crd_distiller_forward.1} parent=1 // pred_fallthru
      _
    %v27 = vld [vmem:[%s0] sm:$0xff]
    %v28 = vld [vmem:[%s0 + $0x8] sm:$0xff]
    %v29 = vld [vmem:[%s0 + $0x10] sm:$0xff]
    %v30 = vld [vmem:[%s0 + $0x18] sm:$0xff]
    %v31 = vld [vmem:[%s0 + $0x20] sm:$0xff]
    %v32 = vld [vmem:[%s0 + $0x28] sm:$0xff]
    %v33 = vld [vmem:[%s0 + $0x30] sm:$0xff]
    %v34 = vld [vmem:[%s0 + $0x38] sm:$0xff]
    %v35 = vld [vmem:[%s1] sm:$0xff]
    %v36 = vld [vmem:[%s1 + $0x8] sm:$0xff]
    %v37 = vld [vmem:[%s1 + $0x10] sm:$0xff]
    %v38 = vld [vmem:[%s1 + $0x18] sm:$0xff]
    %v39 = vld [vmem:[%s1 + $0x20] sm:$0xff]
    %v40 = vld [vmem:[%s1 + $0x28] sm:$0xff]
    %v41 = vld [vmem:[%s1 + $0x30] sm:$0xff]
    %v42 = vld [vmem:[%s1 + $0x38] sm:$0xff]
    %v43 = vld [vmem:[%s1 + $0x40] sm:$0xff]
    %v44 = vld [vmem:[%s1 + $0x48] sm:$0xff]
    %v45 = vld [vmem:[%s1 + $0x50] sm:$0xff]
    %v46 = vld [vmem:[%s1 + $0x58] sm:$0xff]
    %v47 = vld [vmem:[%s1 + $0x60] sm:$0xff]
    %v48 = vld [vmem:[%s1 + $0x68] sm:$0xff]
    %v49 = vld [vmem:[%s1 + $0x70] sm:$0xff]
    %v50 = vld [vmem:[%s1 + $0x78] sm:$0xff]
    %v51 = vld [vmem:[%s1 + $0x80] sm:$0xff]
    %v52 = vld [vmem:[%s1 + $0x88] sm:$0xff]
    %v53 = vld [vmem:[%s1 + $0x90] sm:$0xff]
    %v54 = vld [vmem:[%s1 + $0x98] sm:$0xff]
    %v55 = vld [vmem:[%s1 + $0xa0] sm:$0xff]
    %v56 = vld [vmem:[%s1 + $0xa8] sm:$0xff]
    %v57 = vld [vmem:[%s1 + $0xb0] sm:$0xff]
    %v58 = vld [vmem:[%s1 + $0xb8] sm:$0xff]
    %v59 = vld [vmem:[%s1 + $0xc0] sm:$0xff]
    %v60 = vld [vmem:[%s1 + $0xc8] sm:$0xff]
    %v61 = vld [vmem:[%s1 + $0xd0] sm:$0xff]
    %v62 = vld [vmem:[%s1 + $0xd8] sm:$0xff]
    %v63 = vld [vmem:[%s1 + $0xe0] sm:$0xff]
    %v64 = vld [vmem:[%s1 + $0xe8] sm:$0xff]
    %v65 = vld [vmem:[%s1 + $0xf0] sm:$0xff]
    %v66 = vld [vmem:[%s1 + $0xf8] sm:$0xff]
    %v67 = vld [vmem:[%s1 + $0x100] sm:$0xff]
    %v68 = vld [vmem:[%s1 + $0x108] sm:$0xff]
    %v69 = vld [vmem:[%s1 + $0x110] sm:$0xff]
    %v70 = vld [vmem:[%s1 + $0x118] sm:$0xff]
    %v71 = vld [vmem:[%s1 + $0x120] sm:$0xff]
    %v72 = vld [vmem:[%s1 + $0x128] sm:$0xff]
    %v73 = vld [vmem:[%s1 + $0x130] sm:$0xff]
    %v74 = vld [vmem:[%s1 + $0x138] sm:$0xff]
    %v75 = vld [vmem:[%s1 + $0x140] sm:$0xff]
    %v76 = vld [vmem:[%s1 + $0x148] sm:$0xff]
    %v77 = vld [vmem:[%s1 + $0x150] sm:$0xff]
    %v78 = vld [vmem:[%s1 + $0x158] sm:$0xff]
    %v79 = vld [vmem:[%s1 + $0x160] sm:$0xff]
    %v80 = vld [vmem:[%s1 + $0x168] sm:$0xff]
    %v81 = vld [vmem:[%s1 + $0x170] sm:$0xff]
    %v82 = vld [vmem:[%s1 + $0x178] sm:$0xff]
    %v83 = vld [vmem:[%s1 + $0x180] sm:$0xff]
    %v84 = vld [vmem:[%s1 + $0x188] sm:$0xff]
    %v85 = vld [vmem:[%s1 + $0x190] sm:$0xff]
    %v86 = vld [vmem:[%s1 + $0x198] sm:$0xff]
    %v87 = vld [vmem:[%s1 + $0x1a0] sm:$0xff]
    %v88 = vld [vmem:[%s1 + $0x1a8] sm:$0xff]
    %v89 = vld [vmem:[%s1 + $0x1b0] sm:$0xff]
    %v90 = vld [vmem:[%s1 + $0x1b8] sm:$0xff]
    %v91 = vld [vmem:[%s1 + $0x1c0] sm:$0xff]
    %v92 = vld [vmem:[%s1 + $0x1c8] sm:$0xff]
    %v93 = vld [vmem:[%s1 + $0x1d0] sm:$0xff]
    %v94 = vld [vmem:[%s1 + $0x1d8] sm:$0xff]
    %v95 = vld [vmem:[%s1 + $0x1e0] sm:$0xff]
    %v96 = vld [vmem:[%s1 + $0x1e8] sm:$0xff]
    %v97 = vld [vmem:[%s1 + $0x1f0] sm:$0xff]
    %v98 = vld [vmem:[%s1 + $0x1f8] sm:$0xff]
    %v99 = vld [vmem:[%s1 + $0x200] sm:$0xff]
    %v100 = vld [vmem:[%s1 + $0x208] sm:$0xff]
    %v101 = vld [vmem:[%s1 + $0x210] sm:$0xff]
    %v102 = vld [vmem:[%s1 + $0x218] sm:$0xff]
    %v103 = vld [vmem:[%s1 + $0x220] sm:$0xff]
    %v104 = vld [vmem:[%s1 + $0x228] sm:$0xff]
    %v105 = vld [vmem:[%s1 + $0x230] sm:$0xff]
    %v106 = vld [vmem:[%s1 + $0x238] sm:$0xff]
    %v107 = vld [vmem:[%s1 + $0x240] sm:$0xff]
    %v108 = vld [vmem:[%s1 + $0x248] sm:$0xff]
    %v109 = vld [vmem:[%s1 + $0x250] sm:$0xff]
    %v110 = vld [vmem:[%s1 + $0x258] sm:$0xff]
    %v111 = vld [vmem:[%s1 + $0x260] sm:$0xff]
    %v112 = vld [vmem:[%s1 + $0x268] sm:$0xff]
    %v113 = vld [vmem:[%s1 + $0x270] sm:$0xff]
    %v114 = vld [vmem:[%s1 + $0x278] sm:$0xff]
    %v115 = vld [vmem:[%s1 + $0x280] sm:$0xff]
    %v116 = vld [vmem:[%s1 + $0x288] sm:$0xff]
    %v117 = vld [vmem:[%s1 + $0x290] sm:$0xff]
    %v118 = vld [vmem:[%s1 + $0x298] sm:$0xff]
    %v119 = vld [vmem:[%s1 + $0x2a0] sm:$0xff]
    %v120 = vld [vmem:[%s1 + $0x2a8] sm:$0xff]
    %v121 = vld [vmem:[%s1 + $0x2b0] sm:$0xff]
    %v122 = vld [vmem:[%s1 + $0x2b8] sm:$0xff]
    %v123 = vld [vmem:[%s1 + $0x2c0] sm:$0xff]
    %v124 = vld [vmem:[%s1 + $0x2c8] sm:$0xff]
    %v125 = vld [vmem:[%s1 + $0x2d0] sm:$0xff]
    %v126 = vld [vmem:[%s1 + $0x2d8] sm:$0xff]
    %v127 = vld [vmem:[%s1 + $0x2e0] sm:$0xff]
    %v128 = vld [vmem:[%s1 + $0x2e8] sm:$0xff]
    %v129 = vld [vmem:[%s1 + $0x2f0] sm:$0xff]
    %v130 = vld [vmem:[%s1 + $0x2f8] sm:$0xff]
    %v131 = vld [vmem:[%s1 + $0x300] sm:$0xff]
    %v132 = vld [vmem:[%s1 + $0x308] sm:$0xff]
    %v133 = vld [vmem:[%s1 + $0x310] sm:$0xff]
    %v134 = vld [vmem:[%s1 + $0x318] sm:$0xff]
    %v135 = vld [vmem:[%s1 + $0x320] sm:$0xff]
    %v136 = vld [vmem:[%s1 + $0x328] sm:$0xff]
    %v137 = vld [vmem:[%s1 + $0x330] sm:$0xff]
    %v138 = vld [vmem:[%s1 + $0x338] sm:$0xff]
    %v139 = vld [vmem:[%s1 + $0x340] sm:$0xff]
    %v140 = vld [vmem:[%s1 + $0x348] sm:$0xff]
    %v141 = vld [vmem:[%s1 + $0x350] sm:$0xff]
    %v142 = vld [vmem:[%s1 + $0x358] sm:$0xff]
    %v143 = vld [vmem:[%s1 + $0x360] sm:$0xff]
    %v144 = vld [vmem:[%s1 + $0x368] sm:$0xff]
    %v145 = vld [vmem:[%s1 + $0x370] sm:$0xff]
    %v146 = vld [vmem:[%s1 + $0x378] sm:$0xff]
    %v147 = vld [vmem:[%s1 + $0x380] sm:$0xff]
    %v148 = vld [vmem:[%s1 + $0x388] sm:$0xff]
    %v149 = vld [vmem:[%s1 + $0x390] sm:$0xff]
    %v150 = vld [vmem:[%s1 + $0x398] sm:$0xff]
    %v151 = vld [vmem:[%s1 + $0x3a0] sm:$0xff]
    %v152 = vld [vmem:[%s1 + $0x3a8] sm:$0xff]
    %v153 = vld [vmem:[%s1 + $0x3b0] sm:$0xff]
    %v154 = vld [vmem:[%s1 + $0x3b8] sm:$0xff]
    %v155 = vld [vmem:[%s1 + $0x3c0] sm:$0xff]
    %v156 = vld [vmem:[%s1 + $0x3c8] sm:$0xff]
    %v157 = vld [vmem:[%s1 + $0x3d0] sm:$0xff]
    %v158 = vld [vmem:[%s1 + $0x3d8] sm:$0xff]
    %v159 = vld [vmem:[%s1 + $0x3e0] sm:$0xff]
    %v160 = vld [vmem:[%s1 + $0x3e8] sm:$0xff]
    %v161 = vld [vmem:[%s1 + $0x3f0] sm:$0xff]
    %v162 = vld [vmem:[%s1 + $0x3f8] sm:$0xff]
    %v163 = vld [vmem:[%s1 + $0x400] sm:$0xff]
    %v164 = vld [vmem:[%s1 + $0x408] sm:$0xff]
    %v165 = vld [vmem:[%s1 + $0x410] sm:$0xff]
    %v166 = vld [vmem:[%s1 + $0x418] sm:$0xff]
    %v167 = vld [vmem:[%s1 + $0x420] sm:$0xff]
    %v168 = vld [vmem:[%s1 + $0x428] sm:$0xff]
    %v169 = vld [vmem:[%s1 + $0x430] sm:$0xff]
    %v170 = vld [vmem:[%s1 + $0x438] sm:$0xff]
    %v171 = vld [vmem:[%s1 + $0x440] sm:$0xff]
    %v172 = vld [vmem:[%s1 + $0x448] sm:$0xff]
    %v173 = vld [vmem:[%s1 + $0x450] sm:$0xff]
    %v174 = vld [vmem:[%s1 + $0x458] sm:$0xff]
    %v175 = vld [vmem:[%s1 + $0x460] sm:$0xff]
    %v176 = vld [vmem:[%s1 + $0x468] sm:$0xff]
    %v177 = vld [vmem:[%s1 + $0x470] sm:$0xff]
    %v178 = vld [vmem:[%s1 + $0x478] sm:$0xff]
    %v179 = vld [vmem:[%s1 + $0x480] sm:$0xff]
    %v180 = vld [vmem:[%s1 + $0x488] sm:$0xff]
    %v181 = vld [vmem:[%s1 + $0x490] sm:$0xff]
    %v182 = vld [vmem:[%s1 + $0x498] sm:$0xff]
    %v183 = vld [vmem:[%s1 + $0x4a0] sm:$0xff]
    %v184 = vld [vmem:[%s1 + $0x4a8] sm:$0xff]
    %v185 = vld [vmem:[%s1 + $0x4b0] sm:$0xff]
    %v186 = vld [vmem:[%s1 + $0x4b8] sm:$0xff]
    %v187 = vld [vmem:[%s1 + $0x4c0] sm:$0xff]
    %v188 = vld [vmem:[%s1 + $0x4c8] sm:$0xff]
    %v189 = vld [vmem:[%s1 + $0x4d0] sm:$0xff]
    %v190 = vld [vmem:[%s1 + $0x4d8] sm:$0xff]
    %v191 = vld [vmem:[%s1 + $0x4e0] sm:$0xff]
    %v192 = vld [vmem:[%s1 + $0x4e8] sm:$0xff]
    %v193 = vld [vmem:[%s1 + $0x4f0] sm:$0xff]
    %v194 = vld [vmem:[%s1 + $0x4f8] sm:$0xff]
    %v195 = vld [vmem:[%s1 + $0x500] sm:$0xff]
    %v196 = vld [vmem:[%s1 + $0x508] sm:$0xff]
    %v197 = vld [vmem:[%s1 + $0x510] sm:$0xff]
    %v198 = vld [vmem:[%s1 + $0x518] sm:$0xff]
    %v199 = vld [vmem:[%s1 + $0x520] sm:$0xff]
    %v200 = vld [vmem:[%s1 + $0x528] sm:$0xff]
    %v201 = vld [vmem:[%s1 + $0x530] sm:$0xff]
    %v202 = vld [vmem:[%s1 + $0x538] sm:$0xff]
    %v203 = vld [vmem:[%s1 + $0x540] sm:$0xff]
    %v204 = vld [vmem:[%s1 + $0x548] sm:$0xff]
    %v205 = vld [vmem:[%s1 + $0x550] sm:$0xff]
    %v206 = vld [vmem:[%s1 + $0x558] sm:$0xff]
    %v207 = vld [vmem:[%s1 + $0x560] sm:$0xff]
    %v208 = vld [vmem:[%s1 + $0x568] sm:$0xff]
    %v209 = vld [vmem:[%s1 + $0x570] sm:$0xff]
    %v210 = vld [vmem:[%s1 + $0x578] sm:$0xff]
    %v211 = vld [vmem:[%s1 + $0x580] sm:$0xff]
    %v212 = vld [vmem:[%s1 + $0x588] sm:$0xff]
    %v213 = vld [vmem:[%s1 + $0x590] sm:$0xff]
    %v214 = vld [vmem:[%s1 + $0x598] sm:$0xff]
    %v215 = vld [vmem:[%s1 + $0x5a0] sm:$0xff]
    %v216 = vld [vmem:[%s1 + $0x5a8] sm:$0xff]
    %v217 = vld [vmem:[%s1 + $0x5b0] sm:$0xff]
    %v218 = vld [vmem:[%s1 + $0x5b8] sm:$0xff]
    %v219 = vld [vmem:[%s1 + $0x5c0] sm:$0xff]
    %v220 = vld [vmem:[%s1 + $0x5c8] sm:$0xff]
    %v221 = vld [vmem:[%s1 + $0x5d0] sm:$0xff]
    %v222 = vld [vmem:[%s1 + $0x5d8] sm:$0xff]
    %v223 = vld [vmem:[%s1 + $0x5e0] sm:$0xff]
    %v224 = vld [vmem:[%s1 + $0x5e8] sm:$0xff]
    %v225 = vld [vmem:[%s1 + $0x5f0] sm:$0xff]
    %v226 = vld [vmem:[%s1 + $0x5f8] sm:$0xff]
    %v227 = vld [vmem:[%s1 + $0x600] sm:$0xff]
    %v228 = vld [vmem:[%s1 + $0x608] sm:$0xff]
    %v229 = vld [vmem:[%s1 + $0x610] sm:$0xff]
    %v230 = vld [vmem:[%s1 + $0x618] sm:$0xff]
    %v231 = vld [vmem:[%s1 + $0x620] sm:$0xff]
    %v232 = vld [vmem:[%s1 + $0x628] sm:$0xff]
    %v233 = vld [vmem:[%s1 + $0x630] sm:$0xff]
    %v234 = vld [vmem:[%s1 + $0x638] sm:$0xff]
    %v235 = vld [vmem:[%s1 + $0x640] sm:$0xff]
    %v236 = vld [vmem:[%s1 + $0x648] sm:$0xff]
    %v237 = vld [vmem:[%s1 + $0x650] sm:$0xff]
    %v238 = vld [vmem:[%s1 + $0x658] sm:$0xff]
    %v239 = vld [vmem:[%s1 + $0x660] sm:$0xff]
    %v240 = vld [vmem:[%s1 + $0x668] sm:$0xff]
    %v241 = vld [vmem:[%s1 + $0x670] sm:$0xff]
    %v242 = vld [vmem:[%s1 + $0x678] sm:$0xff]
    %v243 = vld [vmem:[%s1 + $0x680] sm:$0xff]
    %v244 = vld [vmem:[%s1 + $0x688] sm:$0xff]
    %v245 = vld [vmem:[%s1 + $0x690] sm:$0xff]
    %v246 = vld [vmem:[%s1 + $0x698] sm:$0xff]
    %v247 = vld [vmem:[%s1 + $0x6a0] sm:$0xff]
    %v248 = vld [vmem:[%s1 + $0x6a8] sm:$0xff]
    %v249 = vld [vmem:[%s1 + $0x6b0] sm:$0xff]
    %v250 = vld [vmem:[%s1 + $0x6b8] sm:$0xff]
    %v251 = vld [vmem:[%s1 + $0x6c0] sm:$0xff]
    %v252 = vld [vmem:[%s1 + $0x6c8] sm:$0xff]
    %v253 = vld [vmem:[%s1 + $0x6d0] sm:$0xff]
    %v254 = vld [vmem:[%s1 + $0x6d8] sm:$0xff]
    %v255 = vld [vmem:[%s1 + $0x6e0] sm:$0xff]
    %v256 = vld [vmem:[%s1 + $0x6e8] sm:$0xff]
    %v257 = vld [vmem:[%s1 + $0x6f0] sm:$0xff]
    %v258 = vld [vmem:[%s1 + $0x6f8] sm:$0xff]
    %v259 = vld [vmem:[%s1 + $0x700] sm:$0xff]
    %v260 = vld [vmem:[%s1 + $0x708] sm:$0xff]
    %v261 = vld [vmem:[%s1 + $0x710] sm:$0xff]
    %v262 = vld [vmem:[%s1 + $0x718] sm:$0xff]
    %v263 = vld [vmem:[%s1 + $0x720] sm:$0xff]
    %v264 = vld [vmem:[%s1 + $0x728] sm:$0xff]
    %v265 = vld [vmem:[%s1 + $0x730] sm:$0xff]
    %v266 = vld [vmem:[%s1 + $0x738] sm:$0xff]
    %v267 = vld [vmem:[%s1 + $0x740] sm:$0xff]
    %v268 = vld [vmem:[%s1 + $0x748] sm:$0xff]
    %v269 = vld [vmem:[%s1 + $0x750] sm:$0xff]
    %v270 = vld [vmem:[%s1 + $0x758] sm:$0xff]
    %v271 = vld [vmem:[%s1 + $0x760] sm:$0xff]
    %v272 = vld [vmem:[%s1 + $0x768] sm:$0xff]
    %v273 = vld [vmem:[%s1 + $0x770] sm:$0xff]
    %v274 = vld [vmem:[%s1 + $0x778] sm:$0xff]
    %v275 = vld [vmem:[%s1 + $0x780] sm:$0xff]
    %v276 = vld [vmem:[%s1 + $0x788] sm:$0xff]
    %v277 = vld [vmem:[%s1 + $0x790] sm:$0xff]
    %v278 = vld [vmem:[%s1 + $0x798] sm:$0xff]
    %v279 = vld [vmem:[%s1 + $0x7a0] sm:$0xff]
    %v280 = vld [vmem:[%s1 + $0x7a8] sm:$0xff]
    %v281 = vld [vmem:[%s1 + $0x7b0] sm:$0xff]
    %v282 = vld [vmem:[%s1 + $0x7b8] sm:$0xff]
    %v283 = vld [vmem:[%s1 + $0x7c0] sm:$0xff]
    %v284 = vld [vmem:[%s1 + $0x7c8] sm:$0xff]
    %v285 = vld [vmem:[%s1 + $0x7d0] sm:$0xff]
    %v286 = vld [vmem:[%s1 + $0x7d8] sm:$0xff]
    %v287 = vld [vmem:[%s1 + $0x7e0] sm:$0xff]
    %v288 = vld [vmem:[%s1 + $0x7e8] sm:$0xff]
    %v289 = vld [vmem:[%s1 + $0x7f0] sm:$0xff]
    %v290 = vld [vmem:[%s1 + $0x7f8] sm:$0xff]
    %v291 = vld [vmem:[%s2] sm:$0x3]
    %v293 = vlaneseq
    %v294 = vshrl.u32 %v293, 7
    %v295 = vsub.s32 0, %v294
    %v296 = vrot.slane %v291, %v295
    %v297 = vlaneseq
    %v298 = vshrl.u32 %v297, 7
    %v299 = vsub.s32 1, %v298
    %v300 = vrot.slane %v291, %v299
    %303 = vmatprep.subr.mxu0 %v36
    %304 = vmatpush1.msra.mxu0 %v35
    %305 = vmatprep.subr.mxu0 %v38
    %306 = vmatpush1.msra.mxu0 %v37
    %307 = vmatprep.subr.mxu0 %v40
    %308 = vmatpush1.msra.mxu0 %v39
    %309 = vmatprep.subr.mxu0 %v42
    %310 = vmatpush1.msra.mxu0 %v41
    %311 = vmatprep.subr.mxu0 %v44
    %312 = vmatpush1.msra.mxu0 %v43
    %313 = vmatprep.subr.mxu0 %v46
    %314 = vmatpush1.msra.mxu0 %v45
    %315 = vmatprep.subr.mxu0 %v48
    %316 = vmatpush1.msra.mxu0 %v47
    %317 = vmatprep.subr.mxu0 %v50
    %318 = vmatpush1.msra.mxu0 %v49
    %319 = vmatprep.subr.mxu0 %v52
    %320 = vmatpush1.msra.mxu0 %v51
    %321 = vmatprep.subr.mxu0 %v54
    %322 = vmatpush1.msra.mxu0 %v53
    %323 = vmatprep.subr.mxu0 %v56
    %324 = vmatpush1.msra.mxu0 %v55
    %325 = vmatprep.subr.mxu0 %v58
    %326 = vmatpush1.msra.mxu0 %v57
    %327 = vmatprep.subr.mxu0 %v60
    %328 = vmatpush1.msra.mxu0 %v59
    %329 = vmatprep.subr.mxu0 %v62
    %330 = vmatpush1.msra.mxu0 %v61
    %331 = vmatprep.subr.mxu0 %v64
    %332 = vmatpush1.msra.mxu0 %v63
    %333 = vmatprep.subr.mxu0 %v66
    %334 = vmatpush1.msra.mxu0 %v65
    %335 = vmatprep.subr.mxu0 %v68
    %336 = vmatpush1.msra.mxu0 %v67
    %337 = vmatprep.subr.mxu0 %v70
    %338 = vmatpush1.msra.mxu0 %v69
    %339 = vmatprep.subr.mxu0 %v72
    %340 = vmatpush1.msra.mxu0 %v71
    %341 = vmatprep.subr.mxu0 %v74
    %342 = vmatpush1.msra.mxu0 %v73
    %343 = vmatprep.subr.mxu0 %v76
    %344 = vmatpush1.msra.mxu0 %v75
    %345 = vmatprep.subr.mxu0 %v78
    %346 = vmatpush1.msra.mxu0 %v77
    %347 = vmatprep.subr.mxu0 %v80
    %348 = vmatpush1.msra.mxu0 %v79
    %349 = vmatprep.subr.mxu0 %v82
    %350 = vmatpush1.msra.mxu0 %v81
    %351 = vmatprep.subr.mxu0 %v84
    %352 = vmatpush1.msra.mxu0 %v83
    %353 = vmatprep.subr.mxu0 %v86
    %354 = vmatpush1.msra.mxu0 %v85
    %355 = vmatprep.subr.mxu0 %v88
    %356 = vmatpush1.msra.mxu0 %v87
    %357 = vmatprep.subr.mxu0 %v90
    %358 = vmatpush1.msra.mxu0 %v89
    %359 = vmatprep.subr.mxu0 %v92
    %360 = vmatpush1.msra.mxu0 %v91
    %361 = vmatprep.subr.mxu0 %v94
    %362 = vmatpush1.msra.mxu0 %v93
    %363 = vmatprep.subr.mxu0 %v96
    %364 = vmatpush1.msra.mxu0 %v95
    %365 = vmatprep.subr.mxu0 %v98
    %366 = vmatpush1.msra.mxu0 %v97
    %367 = vmatprep.mubr.f32.mxu0 %v28
    %368 = vmatmul.mubr.f32.gmra.mrb[0].mxu0 %v27
    %v369 = vpop.f32.mrb[0].mxu0
    %v370 = vadd.f32 %v296, %v369
    %v371 = vpop.f32.mrb[0].mxu0
    %v372 = vadd.f32 %v300, %v371
    %373 = vdwg.mxu0
    %374 = vmatprep.subr.mxu0 %v100
    %375 = vmatpush1.msra.mxu0 %v99
    %376 = vmatprep.subr.mxu0 %v102
    %377 = vmatpush1.msra.mxu0 %v101
    %378 = vmatprep.subr.mxu0 %v104
    %379 = vmatpush1.msra.mxu0 %v103
    %380 = vmatprep.subr.mxu0 %v106
    %381 = vmatpush1.msra.mxu0 %v105
    %382 = vmatprep.subr.mxu0 %v108
    %383 = vmatpush1.msra.mxu0 %v107
    %384 = vmatprep.subr.mxu0 %v110
    %385 = vmatpush1.msra.mxu0 %v109
    %386 = vmatprep.subr.mxu0 %v112
    %387 = vmatpush1.msra.mxu0 %v111
    %388 = vmatprep.subr.mxu0 %v114
    %389 = vmatpush1.msra.mxu0 %v113
    %390 = vmatprep.subr.mxu0 %v116
    %391 = vmatpush1.msra.mxu0 %v115
    %392 = vmatprep.subr.mxu0 %v118
    %393 = vmatpush1.msra.mxu0 %v117
    %394 = vmatprep.subr.mxu0 %v120
    %395 = vmatpush1.msra.mxu0 %v119
    %396 = vmatprep.subr.mxu0 %v122
    %397 = vmatpush1.msra.mxu0 %v121
    %398 = vmatprep.subr.mxu0 %v124
    %399 = vmatpush1.msra.mxu0 %v123
    %400 = vmatprep.subr.mxu0 %v126
    %401 = vmatpush1.msra.mxu0 %v125
    %402 = vmatprep.subr.mxu0 %v128
    %403 = vmatpush1.msra.mxu0 %v127
    %404 = vmatprep.subr.mxu0 %v130
    %405 = vmatpush1.msra.mxu0 %v129
    %406 = vmatprep.subr.mxu0 %v132
    %407 = vmatpush1.msra.mxu0 %v131
    %408 = vmatprep.subr.mxu0 %v134
    %409 = vmatpush1.msra.mxu0 %v133
    %410 = vmatprep.subr.mxu0 %v136
    %411 = vmatpush1.msra.mxu0 %v135
    %412 = vmatprep.subr.mxu0 %v138
    %413 = vmatpush1.msra.mxu0 %v137
    %414 = vmatprep.subr.mxu0 %v140
    %415 = vmatpush1.msra.mxu0 %v139
    %416 = vmatprep.subr.mxu0 %v142
    %417 = vmatpush1.msra.mxu0 %v141
    %418 = vmatprep.subr.mxu0 %v144
    %419 = vmatpush1.msra.mxu0 %v143
    %420 = vmatprep.subr.mxu0 %v146
    %421 = vmatpush1.msra.mxu0 %v145
    %422 = vmatprep.subr.mxu0 %v148
    %423 = vmatpush1.msra.mxu0 %v147
    %424 = vmatprep.subr.mxu0 %v150
    %425 = vmatpush1.msra.mxu0 %v149
    %426 = vmatprep.subr.mxu0 %v152
    %427 = vmatpush1.msra.mxu0 %v151
    %428 = vmatprep.subr.mxu0 %v154
    %429 = vmatpush1.msra.mxu0 %v153
    %430 = vmatprep.subr.mxu0 %v156
    %431 = vmatpush1.msra.mxu0 %v155
    %432 = vmatprep.subr.mxu0 %v158
    %433 = vmatpush1.msra.mxu0 %v157
    %434 = vmatprep.subr.mxu0 %v160
    %435 = vmatpush1.msra.mxu0 %v159
    %436 = vmatprep.subr.mxu0 %v162
    %437 = vmatpush1.msra.mxu0 %v161
    %438 = vmatprep.mubr.f32.mxu0 %v30
    %439 = vmatmul.mubr.f32.gmra.mrb[0].mxu0 %v29
    %v440 = vpop.f32.mrb[0].mxu0
    %v441 = vadd.f32 %v370, %v440
    %v442 = vpop.f32.mrb[0].mxu0
    %v443 = vadd.f32 %v372, %v442
    %444 = vdwg.mxu0
    %445 = vmatprep.subr.mxu0 %v164
    %446 = vmatpush1.msra.mxu0 %v163
    %447 = vmatprep.subr.mxu0 %v166
    %448 = vmatpush1.msra.mxu0 %v165
    %449 = vmatprep.subr.mxu0 %v168
    %450 = vmatpush1.msra.mxu0 %v167
    %451 = vmatprep.subr.mxu0 %v170
    %452 = vmatpush1.msra.mxu0 %v169
    %453 = vmatprep.subr.mxu0 %v172
    %454 = vmatpush1.msra.mxu0 %v171
    %455 = vmatprep.subr.mxu0 %v174
    %456 = vmatpush1.msra.mxu0 %v173
    %457 = vmatprep.subr.mxu0 %v176
    %458 = vmatpush1.msra.mxu0 %v175
    %459 = vmatprep.subr.mxu0 %v178
    %460 = vmatpush1.msra.mxu0 %v177
    %461 = vmatprep.subr.mxu0 %v180
    %462 = vmatpush1.msra.mxu0 %v179
    %463 = vmatprep.subr.mxu0 %v182
    %464 = vmatpush1.msra.mxu0 %v181
    %465 = vmatprep.subr.mxu0 %v184
    %466 = vmatpush1.msra.mxu0 %v183
    %467 = vmatprep.subr.mxu0 %v186
    %468 = vmatpush1.msra.mxu0 %v185
    %469 = vmatprep.subr.mxu0 %v188
    %470 = vmatpush1.msra.mxu0 %v187
    %471 = vmatprep.subr.mxu0 %v190
    %472 = vmatpush1.msra.mxu0 %v189
    %473 = vmatprep.subr.mxu0 %v192
    %474 = vmatpush1.msra.mxu0 %v191
    %475 = vmatprep.subr.mxu0 %v194
    %476 = vmatpush1.msra.mxu0 %v193
    %477 = vmatprep.subr.mxu0 %v196
    %478 = vmatpush1.msra.mxu0 %v195
    %479 = vmatprep.subr.mxu0 %v198
    %480 = vmatpush1.msra.mxu0 %v197
    %481 = vmatprep.subr.mxu0 %v200
    %482 = vmatpush1.msra.mxu0 %v199
    %483 = vmatprep.subr.mxu0 %v202
    %484 = vmatpush1.msra.mxu0 %v201
    %485 = vmatprep.subr.mxu0 %v204
    %486 = vmatpush1.msra.mxu0 %v203
    %487 = vmatprep.subr.mxu0 %v206
    %488 = vmatpush1.msra.mxu0 %v205
    %489 = vmatprep.subr.mxu0 %v208
    %490 = vmatpush1.msra.mxu0 %v207
    %491 = vmatprep.subr.mxu0 %v210
    %492 = vmatpush1.msra.mxu0 %v209
    %493 = vmatprep.subr.mxu0 %v212
    %494 = vmatpush1.msra.mxu0 %v211
    %495 = vmatprep.subr.mxu0 %v214
    %496 = vmatpush1.msra.mxu0 %v213
    %497 = vmatprep.subr.mxu0 %v216
    %498 = vmatpush1.msra.mxu0 %v215
    %499 = vmatprep.subr.mxu0 %v218
    %500 = vmatpush1.msra.mxu0 %v217
    %501 = vmatprep.subr.mxu0 %v220
    %502 = vmatpush1.msra.mxu0 %v219
    %503 = vmatprep.subr.mxu0 %v222
    %504 = vmatpush1.msra.mxu0 %v221
    %505 = vmatprep.subr.mxu0 %v224
    %506 = vmatpush1.msra.mxu0 %v223
    %507 = vmatprep.subr.mxu0 %v226
    %508 = vmatpush1.msra.mxu0 %v225
    %509 = vmatprep.mubr.f32.mxu0 %v32
    %510 = vmatmul.mubr.f32.gmra.mrb[0].mxu0 %v31
    %v511 = vpop.f32.mrb[0].mxu0
    %v512 = vadd.f32 %v441, %v511
    %v513 = vpop.f32.mrb[0].mxu0
    %v514 = vadd.f32 %v443, %v513
    %515 = vdwg.mxu0
    %516 = vmatprep.subr.mxu0 %v228
    %517 = vmatpush1.msra.mxu0 %v227
    %518 = vmatprep.subr.mxu0 %v230
    %519 = vmatpush1.msra.mxu0 %v229
    %520 = vmatprep.subr.mxu0 %v232
    %521 = vmatpush1.msra.mxu0 %v231
    %522 = vmatprep.subr.mxu0 %v234
    %523 = vmatpush1.msra.mxu0 %v233
    %524 = vmatprep.subr.mxu0 %v236
    %525 = vmatpush1.msra.mxu0 %v235
    %526 = vmatprep.subr.mxu0 %v238
    %527 = vmatpush1.msra.mxu0 %v237
    %528 = vmatprep.subr.mxu0 %v240
    %529 = vmatpush1.msra.mxu0 %v239
    %530 = vmatprep.subr.mxu0 %v242
    %531 = vmatpush1.msra.mxu0 %v241
    %532 = vmatprep.subr.mxu0 %v244
    %533 = vmatpush1.msra.mxu0 %v243
    %534 = vmatprep.subr.mxu0 %v246
    %535 = vmatpush1.msra.mxu0 %v245
    %536 = vmatprep.subr.mxu0 %v248
    %537 = vmatpush1.msra.mxu0 %v247
    %538 = vmatprep.subr.mxu0 %v250
    %539 = vmatpush1.msra.mxu0 %v249
    %540 = vmatprep.subr.mxu0 %v252
    %541 = vmatpush1.msra.mxu0 %v251
    %542 = vmatprep.subr.mxu0 %v254
    %543 = vmatpush1.msra.mxu0 %v253
    %544 = vmatprep.subr.mxu0 %v256
    %545 = vmatpush1.msra.mxu0 %v255
    %546 = vmatprep.subr.mxu0 %v258
    %547 = vmatpush1.msra.mxu0 %v257
    %548 = vmatprep.subr.mxu0 %v260
    %549 = vmatpush1.msra.mxu0 %v259
    %550 = vmatprep.subr.mxu0 %v262
    %551 = vmatpush1.msra.mxu0 %v261
    %552 = vmatprep.subr.mxu0 %v264
    %553 = vmatpush1.msra.mxu0 %v263
    %554 = vmatprep.subr.mxu0 %v266
    %555 = vmatpush1.msra.mxu0 %v265
    %556 = vmatprep.subr.mxu0 %v268
    %557 = vmatpush1.msra.mxu0 %v267
    %558 = vmatprep.subr.mxu0 %v270
    %559 = vmatpush1.msra.mxu0 %v269
    %560 = vmatprep.subr.mxu0 %v272
    %561 = vmatpush1.msra.mxu0 %v271
    %562 = vmatprep.subr.mxu0 %v274
    %563 = vmatpush1.msra.mxu0 %v273
    %564 = vmatprep.subr.mxu0 %v276
    %565 = vmatpush1.msra.mxu0 %v275
    %566 = vmatprep.subr.mxu0 %v278
    %567 = vmatpush1.msra.mxu0 %v277
    %568 = vmatprep.subr.mxu0 %v280
    %569 = vmatpush1.msra.mxu0 %v279
    %570 = vmatprep.subr.mxu0 %v282
    %571 = vmatpush1.msra.mxu0 %v281
    %572 = vmatprep.subr.mxu0 %v284
    %573 = vmatpush1.msra.mxu0 %v283
    %574 = vmatprep.subr.mxu0 %v286
    %575 = vmatpush1.msra.mxu0 %v285
    %576 = vmatprep.subr.mxu0 %v288
    %577 = vmatpush1.msra.mxu0 %v287
    %578 = vmatprep.subr.mxu0 %v290
    %579 = vmatpush1.msra.mxu0 %v289
    %580 = vmatprep.mubr.f32.mxu0 %v34
    %581 = vmatmul.mubr.f32.gmra.mrb[0].mxu0 %v33
    %v582 = vpop.f32.mrb[0].mxu0
    %v583 = vadd.f32 %v512, %v582
    %v584 = vpop.f32.mrb[0].mxu0
    %v585 = vadd.f32 %v514, %v584
    %586 = vdwg.mxu0
    %v587 = vld [vmem:[%s3] sm:$0xff]
    %v588 = vld [vmem:[%s3 + $0x8] sm:$0xff]
    %v589 = vld [vmem:[%s3 + $0x10] sm:$0xff]
    %v590 = vld [vmem:[%s3 + $0x18] sm:$0xff]
    %v591 = vld [vmem:[%s3 + $0x20] sm:$0xff]
    %v592 = vld [vmem:[%s3 + $0x28] sm:$0xff]
    %v593 = vld [vmem:[%s3 + $0x30] sm:$0xff]
    %v594 = vld [vmem:[%s3 + $0x38] sm:$0xff]
    %v595 = vld [vmem:[%s3 + $0x40] sm:$0xff]
    %v596 = vld [vmem:[%s3 + $0x48] sm:$0xff]
    %v597 = vld [vmem:[%s3 + $0x50] sm:$0xff]
    %v598 = vld [vmem:[%s3 + $0x58] sm:$0xff]
    %v599 = vld [vmem:[%s3 + $0x60] sm:$0xff]
    %v600 = vld [vmem:[%s3 + $0x68] sm:$0xff]
    %v601 = vld [vmem:[%s3 + $0x70] sm:$0xff]
    %v602 = vld [vmem:[%s3 + $0x78] sm:$0xff]
    %v603 = vld [vmem:[%s4] sm:$0x1]
    %v605 = vlaneseq
    %v606 = vshrl.u32 %v605, 7
    %v607 = vsub.s32 0, %v606
    %v608 = vrot.slane %v603, %v607
    %610 = vmatprep.subr.mxu0 0.0
    %611 = vmatpush1.msra.mxu0 %v587
    %612 = vmatprep.subr.mxu0 0.0
    %613 = vmatpush1.msra.mxu0 %v588
    %614 = vmatprep.subr.mxu0 0.0
    %615 = vmatpush1.msra.mxu0 %v589
    %616 = vmatprep.subr.mxu0 0.0
    %617 = vmatpush1.msra.mxu0 %v590
    %618 = vmatprep.subr.mxu0 0.0
    %619 = vmatpush1.msra.mxu0 %v591
    %620 = vmatprep.subr.mxu0 0.0
    %621 = vmatpush1.msra.mxu0 %v592
    %622 = vmatprep.subr.mxu0 0.0
    %623 = vmatpush1.msra.mxu0 %v593
    %624 = vmatprep.subr.mxu0 0.0
    %625 = vmatpush1.msra.mxu0 %v594
    %626 = vmatprep.subr.mxu0 0.0
    %627 = vmatpush1.msra.mxu0 %v595
    %628 = vmatprep.subr.mxu0 0.0
    %629 = vmatpush1.msra.mxu0 %v596
    %630 = vmatprep.subr.mxu0 0.0
    %631 = vmatpush1.msra.mxu0 %v597
    %632 = vmatprep.subr.mxu0 0.0
    %633 = vmatpush1.msra.mxu0 %v598
    %634 = vmatprep.subr.mxu0 0.0
    %635 = vmatpush1.msra.mxu0 %v599
    %636 = vmatprep.subr.mxu0 0.0
    %637 = vmatpush1.msra.mxu0 %v600
    %638 = vmatprep.subr.mxu0 0.0
    %639 = vmatpush1.msra.mxu0 %v601
    %640 = vmatprep.subr.mxu0 0.0
    %641 = vmatpush1.msra.mxu0 %v602
    %642 = vmatprep.subr.mxu0 0.0
    %643 = vmatpush1.msra.mxu0 0.0
    %644 = vmatprep.subr.mxu0 0.0
    %645 = vmatpush1.msra.mxu0 0.0
    %646 = vmatprep.subr.mxu0 0.0
    %647 = vmatpush1.msra.mxu0 0.0
    %648 = vmatprep.subr.mxu0 0.0
    %649 = vmatpush1.msra.mxu0 0.0
    %650 = vmatprep.subr.mxu0 0.0
    %651 = vmatpush1.msra.mxu0 0.0
    %652 = vmatprep.subr.mxu0 0.0
    %653 = vmatpush1.msra.mxu0 0.0
    %654 = vmatprep.subr.mxu0 0.0
    %655 = vmatpush1.msra.mxu0 0.0
    %656 = vmatprep.subr.mxu0 0.0
    %657 = vmatpush1.msra.mxu0 0.0
    %658 = vmatprep.subr.mxu0 0.0
    %659 = vmatpush1.msra.mxu0 0.0
    %660 = vmatprep.subr.mxu0 0.0
    %661 = vmatpush1.msra.mxu0 0.0
    %662 = vmatprep.subr.mxu0 0.0
    %663 = vmatpush1.msra.mxu0 0.0
    %664 = vmatprep.subr.mxu0 0.0
    %665 = vmatpush1.msra.mxu0 0.0
    %666 = vmatprep.subr.mxu0 0.0
    %667 = vmatpush1.msra.mxu0 0.0
    %668 = vmatprep.subr.mxu0 0.0
    %669 = vmatpush1.msra.mxu0 0.0
    %670 = vmatprep.subr.mxu0 0.0
    %671 = vmatpush1.msra.mxu0 0.0
    %672 = vmatprep.subr.mxu0 0.0
    %673 = vmatpush1.msra.mxu0 0.0
    %674 = vmatprep.mubr.f32.mxu0 0.0
    %675 = vmatmul.mubr.f32.gmra.mrb[0].mxu0 %v585
    %v676 = vpop.f32.mrb[0].mxu0
    %v677 = vadd.f32 %v608, %v676
    %v678 = vpop.f32.mrb[0].mxu0
    %679 = vdwg.mxu0
    %680 = vst [vmem:[#allocation2] sm:$0xff] %v677
    %v681 = vmul.f32 %v585, %v585
    %682 = vadd.xlane.f32.xlu0 %v681
    %v683 = vpop.xlane.xlu0 %682
    %v684 = vadd.f32 %v683, 1e-12
    %v685 = vrsqrt.pop %v684
    %v686 = vmul.f32 %v685, 14.285714
    %v687 = vmul.f32 %v585, %v686
    %v688 = vmul.f32 %v583, %v583
    %689 = vadd.xlane.f32.xlu0 %v688
    %v690 = vpop.xlane.xlu0 %689
    %v691 = vadd.f32 %v690, 1e-12
    %v692 = vrsqrt.pop %v691
    %v693 = vmul.f32 %v583, %v692
    %694 = vmatprep.subr.mxu0 0.0
    %695 = vmatpush1.xpose.msra.mxu0 %v693
    %696 = vmatprep.subr.mxu0 0.0
    %697 = vmatpush1.xpose.msra.mxu0 0.0
    %698 = vmatprep.subr.mxu0 0.0
    %699 = vmatpush1.xpose.msra.mxu0 0.0
    %700 = vmatprep.subr.mxu0 0.0
    %701 = vmatpush1.xpose.msra.mxu0 0.0
    %702 = vmatprep.subr.mxu0 0.0
    %703 = vmatpush1.xpose.msra.mxu0 0.0
    %704 = vmatprep.subr.mxu0 0.0
    %705 = vmatpush1.xpose.msra.mxu0 0.0
    %706 = vmatprep.subr.mxu0 0.0
    %707 = vmatpush1.xpose.msra.mxu0 0.0
    %708 = vmatprep.subr.mxu0 0.0
    %709 = vmatpush1.xpose.msra.mxu0 0.0
    %710 = vmatprep.subr.mxu0 0.0
    %711 = vmatpush1.xpose.msra.mxu0 0.0
    %712 = vmatprep.subr.mxu0 0.0
    %713 = vmatpush1.xpose.msra.mxu0 0.0
    %714 = vmatprep.subr.mxu0 0.0
    %715 = vmatpush1.xpose.msra.mxu0 0.0
    %716 = vmatprep.subr.mxu0 0.0
    %717 = vmatpush1.xpose.msra.mxu0 0.0
    %718 = vmatprep.subr.mxu0 0.0
    %719 = vmatpush1.xpose.msra.mxu0 0.0
    %720 = vmatprep.subr.mxu0 0.0
    %721 = vmatpush1.xpose.msra.mxu0 0.0
    %722 = vmatprep.subr.mxu0 0.0
    %723 = vmatpush1.xpose.msra.mxu0 0.0
    %724 = vmatprep.subr.mxu0 0.0
    %725 = vmatpush1.xpose.msra.mxu0 0.0
    %726 = vmatprep.subr.mxu0 0.0
    %727 = vmatpush1.xpose.msra.mxu0 0.0
    %728 = vmatprep.subr.mxu0 0.0
    %729 = vmatpush1.xpose.msra.mxu0 0.0
    %730 = vmatprep.subr.mxu0 0.0
    %731 = vmatpush1.xpose.msra.mxu0 0.0
    %732 = vmatprep.subr.mxu0 0.0
    %733 = vmatpush1.xpose.msra.mxu0 0.0
    %734 = vmatprep.subr.mxu0 0.0
    %735 = vmatpush1.xpose.msra.mxu0 0.0
    %736 = vmatprep.subr.mxu0 0.0
    %737 = vmatpush1.xpose.msra.mxu0 0.0
    %738 = vmatprep.subr.mxu0 0.0
    %739 = vmatpush1.xpose.msra.mxu0 0.0
    %740 = vmatprep.subr.mxu0 0.0
    %741 = vmatpush1.xpose.msra.mxu0 0.0
    %742 = vmatprep.subr.mxu0 0.0
    %743 = vmatpush1.xpose.msra.mxu0 0.0
    %744 = vmatprep.subr.mxu0 0.0
    %745 = vmatpush1.xpose.msra.mxu0 0.0
    %746 = vmatprep.subr.mxu0 0.0
    %747 = vmatpush1.xpose.msra.mxu0 0.0
    %748 = vmatprep.subr.mxu0 0.0
    %749 = vmatpush1.xpose.msra.mxu0 0.0
    %750 = vmatprep.subr.mxu0 0.0
    %751 = vmatpush1.xpose.msra.mxu0 0.0
    %752 = vmatprep.subr.mxu0 0.0
    %753 = vmatpush1.xpose.msra.mxu0 0.0
    %754 = vmatprep.subr.mxu0 0.0
    %755 = vmatpush1.xpose.msra.mxu0 0.0
    %756 = vmatprep.subr.mxu0 0.0
    %757 = vmatpush1.xpose.msra.mxu0 0.0
    %758 = vmatprep.mubr.f32.mxu0 0.0
    %759 = vmatmul.mubr.f32.gmra.mrb[0].mxu0 %v687
    %v760 = vpop.f32.mrb[0].mxu0
    %v761 = vadd.f32 0.0, %v760
    %v762 = vpop.f32.mrb[0].mxu0
    %763 = vdwg.mxu0
    %v764 = vmul.f32 %v687, %v693
    %765 = vadd.xlane.f32.xlu0 %v764
    %v766 = vpop.xlane.xlu0 %765
    %vm767 = vcmask 64512
    %v768 = vsel %vm767, %v761, -inf
    %769 = vmax.xlane.f32.xlu0 %v768
    %v770 = vpop.xlane.xlu0 %769
    %v771 = vsub.f32 %v761, %v770
    %v772 = vmul.f32 %v771, 1.442695
    %v773 = vpow.pop %v772
    %v774 = vsel %vm767, %v773, 0.0
    %775 = vadd.xlane.f32.xlu0 %v774
    %v776 = vpop.xlane.xlu0 %775
    %v777 = vlog2.pop %v776
    %v778 = vmul.f32 %v777, 0.6931472
    %v779 = vadd.f32 %v770, %v778
    %v780 = vsub.f32 %v779, %v766
    %vm781 = vcmask 7168
    %782 = vst.msk [vmem:[%s7] sm:$0xff] %vm781, %v780
    %v783 = vlaneseq
    %v784 = vand.u32 %v783, 127
    %v785 = vld [vmem:[%s5] sm:$0xff]
    %786 = vset.pattern.permute.xlu0 0
    %787 = vperm.xlu0 %786, %v785
    %v788 = vpop.permute.xlu0 %787
    %vm789 = vcmp.eq.s32.totalorder %v784, %v788
    %v790 = vsel %vm789, %v677, 0.0
    %791 = vadd.xlane.f32.xlu0 %v790
    %v792 = vpop.xlane.xlu0 %791
    %793 = vmax.xlane.f32.xlu0 %v677
    %v794 = vpop.xlane.xlu0 %793
    %v795 = vsub.f32 %v677, %v794
    %v796 = vmul.f32 %v795, 1.442695
    %v797 = vpow.pop %v796
    %798 = vadd.xlane.f32.xlu0 %v797
    %v799 = vpop.xlane.xlu0 %798
    %v800 = vlog2.pop %v799
    %v801 = vmul.f32 %v800, 0.6931472
    %v802 = vadd.f32 %v794, %v801
    %v803 = vsub.f32 %v802, %v792
    %804 = vst.msk [vmem:[%s8] sm:$0xff] %vm781, %v803
    // Predicated region
    $region26: #{crd_distiller_forward.1} parent=1 // pred_check
      _
    $region27: #{crd_distiller_forward.1} parent=1 // pred_check_branch
      %806 = sbr.rel (0) target = $region29
    $region28: #{crd_distiller_forward.1} parent=1 // pred_region
      %s808 = ssub.s32 128, 128
      %809 = vsyncadd [#allocation3], %s808
      %s811 = sshll.u32 [#allocation2], 4
      %s812 = int_to_ptr.vmem [resolvable:$true] %s811
      %814 = dma.vmem_to_hbm [thread:$0]  %s812, 128, %s6, [#allocation3]
    $region29: #{crd_distiller_forward.1} parent=1 // pred_fallthru
      _
    // Predicated region
    $region30: #{crd_distiller_forward.1} parent=1 // pred_check
      _
    $region31: #{crd_distiller_forward.1} parent=1 // pred_check_branch
      %816 = sbr.rel (0) target = $region33
    $region32: #{crd_distiller_forward.1} parent=1 // pred_region
      _
    $region33: #{crd_distiller_forward.1} parent=1 // pred_fallthru
      _
    // Predicated region
    $region34: #{crd_distiller_forward.1} parent=1 // pred_check
      _
    $region35: #{crd_distiller_forward.1} parent=1 // pred_check_branch
      %818 = sbr.rel (0) target = $region37
    $region36: #{crd_distiller_forward.1} parent=1 // pred_region
      _
    $region37: #{crd_distiller_forward.1} parent=1 // pred_fallthru
      _
    // Predicated region
    $region38: #{crd_distiller_forward.1} parent=1 // pred_check
      _
    $region39: #{crd_distiller_forward.1} parent=1 // pred_check_branch
      %820 = sbr.rel (0) target = $region41
    $region40: #{crd_distiller_forward.1} parent=1 // pred_region
      %821 = dma.done [#allocation3], 128
    $region41: #{crd_distiller_forward.1} parent=1 // pred_fallthru
      _
    // Predicated region
    $region42: #{crd_distiller_forward.1} parent=1 // pred_check
      _
    $region43: #{crd_distiller_forward.1} parent=1 // pred_check_branch
      %823 = sbr.rel (0) target = $region45
    $region44: #{crd_distiller_forward.1} parent=1 // pred_region
      _
    $region45: #{crd_distiller_forward.1} parent=1 // pred_fallthru
      _
    // Predicated region
    $region46: #{crd_distiller_forward.1} parent=1 // pred_check
      _
    $region47: #{crd_distiller_forward.1} parent=1 // pred_check_branch
      %825 = sbr.rel (0) target = $region49
    $region48: #{crd_distiller_forward.1} parent=1 // pred_region
      _
    $region49: #{crd_distiller_forward.1} parent=1 // pred_fallthru
      _
    %826 = vsyncpa [#allocation3], 1

</llo_original>
